<compile_context>
chip_gen: v5e
topology: v5e:2x2
jax: 0.10.0
libtpu: 0.0.40
codegen_flags: <defaults>
</compile_context>

<pallas_src>
import math
import jax
import jax.numpy as jnp
from jax.experimental import pallas as pl
from jax.experimental.pallas import tpu as pltpu


def _logreg_kernel(x_ref, w_ref, b_ref, o_ref):
    """out[0, :] = sigmoid(W @ x + b), emitted as a lane-dense row.

    x_ref: (1, K)  flattened input (lane-dense)
    w_ref: (C, K)  native nn.Linear weight layout (lane-dense)
    b_ref: (1, C)  bias as a row
    o_ref: (1, C)  output row
    """
    x = x_ref[...]                                   # (1, K)
    w = w_ref[...]                                   # (C, K)

    # VPU broadcast-multiply + XLU lane reduction: z[c] = sum_k W[c, k] * x[k]
    z_col = jnp.sum(w * x, axis=-1, keepdims=True)   # (C, 1) f32

    # Column -> lane-dense row without a materialized transpose: mask the
    # column against a one-hot identity and reduce over sublanes.  C is tiny,
    # so this is one padded vreg of VPU work + one sublane reduction, all in
    # slack slots.
    c = o_ref.shape[-1]
    rows = jax.lax.broadcasted_iota(jnp.int32, (c, c), 0)
    cols = jax.lax.broadcasted_iota(jnp.int32, (c, c), 1)
    onehot = (rows == cols).astype(jnp.float32)               # (C, C) identity
    z_row = jnp.sum(z_col * onehot, axis=0, keepdims=True)    # (1, C)

    # Bias add (VPU) + sigmoid (EUP exp/reciprocal), single contiguous store.
    o_ref[...] = jax.nn.sigmoid(z_row + b_ref[...]).astype(o_ref.dtype)


def logreg_forward(x, weight, bias):
    """Pallas LogReg forward.

    x:      any shape, flattened like torch .view(-1); prod(shape) == input_size
    weight: (num_classes, input_size)  -- native PyTorch nn.Linear layout
    bias:   (num_classes,)
    returns (num_classes,) float32
    """
    num_classes, input_size = weight.shape
    assert int(x.size) == input_size, "x must flatten to input_size elements"

    x_row = x.astype(jnp.float32).reshape(1, input_size)         # (1, K)
    w = weight.astype(jnp.float32)                               # (C, K), no transpose
    b_row = bias.astype(jnp.float32).reshape(1, num_classes)     # (1, C) lane-dense

    flops = 2 * num_classes * input_size
    bytes_accessed = 4 * (input_size + num_classes * input_size + 2 * num_classes)

    out = pl.pallas_call(
        _logreg_kernel,
        out_shape=jax.ShapeDtypeStruct((1, num_classes), jnp.float32),
        # Gridless: whole-array VMEM-resident blocks, no pipelining machinery.
        in_specs=[
            pl.BlockSpec(memory_space=pltpu.MemorySpace.VMEM),   # x
            pl.BlockSpec(memory_space=pltpu.MemorySpace.VMEM),   # W (native layout)
            pl.BlockSpec(memory_space=pltpu.MemorySpace.VMEM),   # bias
        ],
        out_specs=pl.BlockSpec(memory_space=pltpu.MemorySpace.VMEM),
        cost_estimate=pl.CostEstimate(
            flops=flops,
            transcendentals=num_classes,
            bytes_accessed=bytes_accessed,
        ),
    )(x_row, w, b_row)

    return out.reshape(num_classes)


def _ref_forward(x, weight, bias):
    """Pure-JAX reference matching torch.sigmoid(Linear(x.float().view(-1)))."""
    xf = x.astype(jnp.float32).reshape(-1)
    return jax.nn.sigmoid(weight.astype(jnp.float32) @ xf + bias.astype(jnp.float32))


if __name__ == "__main__":
    # Small shapes: x is NCHW (2, 4, 16, 16) -> input_size = 2048, num_classes = 10.
    key = jax.random.PRNGKey(0)
    k_x, k_w, k_b = jax.random.split(key, 3)

    x = jax.random.normal(k_x, (2, 4, 16, 16), dtype=jnp.float32)

    input_size = int(x.size)          # 2048
    num_classes = 10

    # Deterministic init matching nn.Linear default: U(-1/sqrt(in), 1/sqrt(in)).
    bound = 1.0 / math.sqrt(input_size)
    weight = jax.random.uniform(
        k_w, (num_classes, input_size), minval=-bound, maxval=bound, dtype=jnp.float32
    )
    bias = jax.random.uniform(
        k_b, (num_classes,), minval=-bound, maxval=bound, dtype=jnp.float32
    )

    out = logreg_forward(x, weight, bias)
    out = jax.block_until_ready(out)

    ref = _ref_forward(x, weight, bias)
    assert out.shape == (num_classes,)
    assert jnp.allclose(out, ref, atol=1e-5, rtol=1e-5), (out, ref)

    print("KERNEL_OK")
</pallas_src>

<mosaic_0001>
module attributes {stable_mosaic.version = 11 : i64} {
  func.func @_logreg_kernel(%arg0: memref<1x2048xf32, #tpu.memory_space<vmem>>, %arg1: memref<10x2048xf32, #tpu.memory_space<vmem>>, %arg2: memref<1x10xf32, #tpu.memory_space<vmem>>, %arg3: memref<1x10xf32, #tpu.memory_space<vmem>>) attributes {dimension_semantics = [], scalar_prefetch = 0 : i64, scratch_operands = 0 : i64, tpu.core_type = #tpu.core_type<tc>} {
    %c0 = arith.constant 0 : index
    %c0_0 = arith.constant 0 : index
    %0 = vector.load %arg0[%c0, %c0_0] : memref<1x2048xf32, #tpu.memory_space<vmem>>, vector<1x2048xf32>
    %c0_1 = arith.constant 0 : index
    %c0_2 = arith.constant 0 : index
    %1 = vector.load %arg1[%c0_1, %c0_2] : memref<10x2048xf32, #tpu.memory_space<vmem>>, vector<10x2048xf32>
    %2 = vector.broadcast %0 : vector<1x2048xf32> to vector<10x2048xf32>
    %3 = arith.mulf %1, %2 : vector<10x2048xf32>
    %cst = arith.constant dense<0.000000e+00> : vector<10xf32>
    %4 = vector.multi_reduction <add>, %3, %cst [1] : vector<10x2048xf32> to vector<10xf32>
    %5 = vector.shape_cast %4 : vector<10xf32> to vector<10x1xf32>
    %6 = tpu.iota {dimensions = array<i32: 0>} : vector<10x10xi32>
    %7 = tpu.iota {dimensions = array<i32: 1>} : vector<10x10xi32>
    %8 = arith.cmpi eq, %6, %7 : vector<10x10xi32>
    %9 = arith.extui %8 : vector<10x10xi1> to vector<10x10xi32>
    %10 = arith.sitofp %9 : vector<10x10xi32> to vector<10x10xf32>
    %11 = vector.broadcast %5 : vector<10x1xf32> to vector<10x10xf32>
    %12 = arith.mulf %11, %10 : vector<10x10xf32>
    %cst_3 = arith.constant dense<0.000000e+00> : vector<10xf32>
    %13 = vector.multi_reduction <add>, %12, %cst_3 [0] : vector<10x10xf32> to vector<10xf32>
    %14 = vector.shape_cast %13 : vector<10xf32> to vector<1x10xf32>
    %c0_4 = arith.constant 0 : index
    %c0_5 = arith.constant 0 : index
    %15 = vector.load %arg2[%c0_4, %c0_5] : memref<1x10xf32, #tpu.memory_space<vmem>>, vector<1x10xf32>
    %16 = arith.addf %14, %15 : vector<1x10xf32>
    %17 = arith.negf %16 : vector<1x10xf32>
    %18 = math.exp %17 : vector<1x10xf32>
    %cst_6 = arith.constant 1.000000e+00 : f32
    %19 = vector.broadcast %cst_6 : f32 to vector<1x10xf32>
    %20 = arith.addf %19, %18 : vector<1x10xf32>
    %21 = arith.divf %19, %20 : vector<1x10xf32>
    %c0_7 = arith.constant 0 : index
    %c0_8 = arith.constant 0 : index
    %22 = vector.load %arg3[%c0_7, %c0_8] : memref<1x10xf32, #tpu.memory_space<vmem>>, vector<1x10xf32>
    tpu.vector_store %arg3[%c0_7, %c0_8], %21 {strides = array<i32>} : memref<1x10xf32, #tpu.memory_space<vmem>>, vector<1x10xf32>,
    return
  }
}

</mosaic_0001>

<llo_original>
// kernel: tpu_custom_call.1
$region0: #{tpu_custom_call.1}
  #allocation0 [shape = 'u32[]', space=smem, size = 0x4, offset = 0x4, fixed_abs, tag = 'smem constant byte address 0x4 - core index']
  #allocation1 [shape = 'u32[72,128]{1,0:T(1,128)}', space=vmem, size = 0x9000, scoped, tag = 'internal scratch']
  %s0 = inlined_call_operand.hbm [shape: f32[1,2048], index: 0, kind: input, shape index: {}]
  %s1 = inlined_call_operand.hbm [shape: f32[10,2048], index: 1, kind: input, shape index: {}]
  %s2 = inlined_call_operand.vmem [shape: f32[1,10], index: 2, kind: input, shape index: {}]
  %s3 = inlined_call_operand.hbm [shape: f32[1,10], index: 3, kind: output, shape index: {}]
  %s4 = sld [smem:[#allocation0]]
  $region30: #{tpu_custom_call.1} parent=0
    _
  %s6 = ssub.s32 1, %s4
  %s7 = scalar_select 0, %s6, %s4
  $region1: #{tpu_custom_call.1} parent=0
    #allocation2 [shape = 'u8[8192]{0}', space=vmem, size = 0x2000, scoped, tag = 'input window, operand 0, single buffered']
    #allocation3 [shape = 's32[1]{0}', space=sflag, size = 0x4, scoped, tag = 'scoped memory for tpu_custom_call.1']
    #allocation4 [shape = 's32[1]{0}', space=sflag, size = 0x4, scoped, tag = 'scoped memory for tpu_custom_call.1']
    #allocation5 [shape = 'u8[131072]{0}', space=vmem, size = 0x20000, scoped, tag = 'input window, operand 1, single buffered']
    #allocation6 [shape = 's32[1]{0}', space=sflag, size = 0x4, scoped, tag = 'scoped memory for tpu_custom_call.1']
    #allocation7 [shape = 'u8[512]{0}', space=vmem, size = 0x400, scoped, tag = 'output window, operand 0, single buffered']
    %8 = vsyncpa [#allocation3], 0
    %9 = vsyncpa [#allocation6], 0
    %10 = vsyncpa [#allocation4], 0
    // Predicated region
    $region2: #{tpu_custom_call.1} parent=1 // pred_check
      _
    $region3: #{tpu_custom_call.1} parent=1 // pred_check_branch
      %12 = sbr.rel (0) target = $region5
    $region4: #{tpu_custom_call.1} parent=1 // pred_region
      %14 = vsyncadd [#allocation3], 0
      %s16 = sshll.u32 %s0, 4
      %s17 = int_to_ptr.hbm [resolvable:$true] %s16
      %s18 = sshll.u32 [#allocation2], 4
      %s19 = int_to_ptr.vmem [resolvable:$true] %s18
      %21 = dma.hbm_to_vmem [thread:$0]  %s17, 256, %s19, [#allocation3]
    $region5: #{tpu_custom_call.1} parent=1 // pred_fallthru
      _
    // Predicated region
    $region6: #{tpu_custom_call.1} parent=1 // pred_check
      _
    $region7: #{tpu_custom_call.1} parent=1 // pred_check_branch
      %23 = sbr.rel (0) target = $region9
    $region8: #{tpu_custom_call.1} parent=1 // pred_region
      %25 = vsyncadd [#allocation6], 0
      %s26 = sshll.u32 %s1, 4
      %s27 = int_to_ptr.hbm [resolvable:$true] %s26
      %s28 = sshll.u32 [#allocation5], 4
      %s29 = int_to_ptr.vmem [resolvable:$true] %s28
      %34 = dma.hbm_to_vmem [thread:$0]  %s27, 4096, %s29, [#allocation6], 2048, 2048, 128
    $region9: #{tpu_custom_call.1} parent=1 // pred_fallthru
      _
    // Predicated region
    $region10: #{tpu_custom_call.1} parent=1 // pred_check
      _
    $region11: #{tpu_custom_call.1} parent=1 // pred_check_branch
      %36 = sbr.rel (0) target = $region13
    $region12: #{tpu_custom_call.1} parent=1 // pred_region
      _
    $region13: #{tpu_custom_call.1} parent=1 // pred_fallthru
      _
    // Predicated region
    $region14: #{tpu_custom_call.1} parent=1 // pred_check
      _
    $region15: #{tpu_custom_call.1} parent=1 // pred_check_branch
      %38 = sbr.rel (0) target = $region17
    $region16: #{tpu_custom_call.1} parent=1 // pred_region
      %40 = dma.done [#allocation3], 256
    $region17: #{tpu_custom_call.1} parent=1 // pred_fallthru
      _
    // Predicated region
    $region18: #{tpu_custom_call.1} parent=1 // pred_check
      _
    $region19: #{tpu_custom_call.1} parent=1 // pred_check_branch
      %42 = sbr.rel (0) target = $region21
    $region20: #{tpu_custom_call.1} parent=1 // pred_region
      %44 = dma.done [#allocation6], 4096
    $region21: #{tpu_custom_call.1} parent=1 // pred_fallthru
      _
    %v45 = vld [vmem:[#allocation2] sm:$0xff]
    %v46 = vld [vmem:[#allocation2 + $0x8] sm:$0xff]
    %v47 = vld [vmem:[#allocation5] sm:$0xff]
    %v48 = vld [vmem:[#allocation5 + $0x8] sm:$0xff]
    %v49 = vld [vmem:[#allocation5 + $0x10] sm:$0xff]
    %v50 = vld [vmem:[#allocation5 + $0x18] sm:$0xff]
    %v51 = vld [vmem:[#allocation5 + $0x20] sm:$0xff]
    %v52 = vld [vmem:[#allocation5 + $0x28] sm:$0xff]
    %v53 = vld [vmem:[#allocation5 + $0x30] sm:$0xff]
    %v54 = vld [vmem:[#allocation5 + $0x38] sm:$0xff]
    %v55 = vld [vmem:[#allocation5 + $0x40] sm:$0xff]
    %v56 = vld [vmem:[#allocation5 + $0x48] sm:$0xff]
    %v57 = vld [vmem:[#allocation5 + $0x50] sm:$0xff]
    %v58 = vld [vmem:[#allocation5 + $0x58] sm:$0xff]
    %v59 = vld [vmem:[#allocation5 + $0x60] sm:$0xff]
    %v60 = vld [vmem:[#allocation5 + $0x68] sm:$0xff]
    %v61 = vld [vmem:[#allocation5 + $0x70] sm:$0xff]
    %v62 = vld [vmem:[#allocation5 + $0x78] sm:$0xff]
    %v63 = vld [vmem:[#allocation5 + $0x80] sm:$0x3]
    %v64 = vld [vmem:[#allocation5 + $0x88] sm:$0x3]
    %v65 = vld [vmem:[#allocation5 + $0x90] sm:$0x3]
    %v66 = vld [vmem:[#allocation5 + $0x98] sm:$0x3]
    %v67 = vld [vmem:[#allocation5 + $0xa0] sm:$0x3]
    %v68 = vld [vmem:[#allocation5 + $0xa8] sm:$0x3]
    %v69 = vld [vmem:[#allocation5 + $0xb0] sm:$0x3]
    %v70 = vld [vmem:[#allocation5 + $0xb8] sm:$0x3]
    %v71 = vld [vmem:[#allocation5 + $0xc0] sm:$0x3]
    %v72 = vld [vmem:[#allocation5 + $0xc8] sm:$0x3]
    %v73 = vld [vmem:[#allocation5 + $0xd0] sm:$0x3]
    %v74 = vld [vmem:[#allocation5 + $0xd8] sm:$0x3]
    %v75 = vld [vmem:[#allocation5 + $0xe0] sm:$0x3]
    %v76 = vld [vmem:[#allocation5 + $0xe8] sm:$0x3]
    %v77 = vld [vmem:[#allocation5 + $0xf0] sm:$0x3]
    %v78 = vld [vmem:[#allocation5 + $0xf8] sm:$0x3]
    %v81 = vperm.slane %v45, 0
    %v82 = vperm.slane %v45, 1
    %v83 = vperm.slane %v45, 2
    %v84 = vperm.slane %v45, 3
    %v85 = vperm.slane %v45, 4
    %v86 = vperm.slane %v45, 5
    %v87 = vperm.slane %v45, 6
    %v88 = vperm.slane %v45, 7
    %v89 = vperm.slane %v46, 0
    %v90 = vperm.slane %v46, 1
    %v91 = vperm.slane %v46, 2
    %v92 = vperm.slane %v46, 3
    %v93 = vperm.slane %v46, 4
    %v94 = vperm.slane %v46, 5
    %v95 = vperm.slane %v46, 6
    %v96 = vperm.slane %v46, 7
    %v113 = vmul.f32 %v47, %v81
    %v114 = vmul.f32 %v48, %v82
    %v115 = vmul.f32 %v49, %v83
    %v116 = vmul.f32 %v50, %v84
    %v117 = vmul.f32 %v51, %v85
    %v118 = vmul.f32 %v52, %v86
    %v119 = vmul.f32 %v53, %v87
    %v120 = vmul.f32 %v54, %v88
    %v121 = vmul.f32 %v55, %v89
    %v122 = vmul.f32 %v56, %v90
    %v123 = vmul.f32 %v57, %v91
    %v124 = vmul.f32 %v58, %v92
    %v125 = vmul.f32 %v59, %v93
    %v126 = vmul.f32 %v60, %v94
    %v127 = vmul.f32 %v61, %v95
    %v128 = vmul.f32 %v62, %v96
    %v129 = vmul.f32 %v63, %v81
    %v130 = vmul.f32 %v64, %v82
    %v131 = vmul.f32 %v65, %v83
    %v132 = vmul.f32 %v66, %v84
    %v133 = vmul.f32 %v67, %v85
    %v134 = vmul.f32 %v68, %v86
    %v135 = vmul.f32 %v69, %v87
    %v136 = vmul.f32 %v70, %v88
    %v137 = vmul.f32 %v71, %v89
    %v138 = vmul.f32 %v72, %v90
    %v139 = vmul.f32 %v73, %v91
    %v140 = vmul.f32 %v74, %v92
    %v141 = vmul.f32 %v75, %v93
    %v142 = vmul.f32 %v76, %v94
    %v143 = vmul.f32 %v77, %v95
    %v144 = vmul.f32 %v78, %v96
    %v145 = vadd.f32 %v113, %v114
    %v146 = vadd.f32 %v145, %v115
    %v147 = vadd.f32 %v146, %v116
    %v148 = vadd.f32 %v147, %v117
    %v149 = vadd.f32 %v148, %v118
    %v150 = vadd.f32 %v149, %v119
    %v151 = vadd.f32 %v150, %v120
    %v152 = vadd.f32 %v151, %v121
    %v153 = vadd.f32 %v152, %v122
    %v154 = vadd.f32 %v153, %v123
    %v155 = vadd.f32 %v154, %v124
    %v156 = vadd.f32 %v155, %v125
    %v157 = vadd.f32 %v156, %v126
    %v158 = vadd.f32 %v157, %v127
    %v159 = vadd.f32 %v158, %v128
    %160 = vadd.xlane.f32.xlu0 %v159
    %v161 = vpop.xlane.xlu0 %160
    %vm162 = vcmask 1041408
    %v163 = vsel %vm162, %v129, 0.0
    %v164 = vsel %vm162, %v130, 0.0
    %v165 = vadd.f32 %v163, %v164
    %v166 = vsel %vm162, %v131, 0.0
    %v167 = vadd.f32 %v165, %v166
    %v168 = vsel %vm162, %v132, 0.0
    %v169 = vadd.f32 %v167, %v168
    %v170 = vsel %vm162, %v133, 0.0
    %v171 = vadd.f32 %v169, %v170
    %v172 = vsel %vm162, %v134, 0.0
    %v173 = vadd.f32 %v171, %v172
    %v174 = vsel %vm162, %v135, 0.0
    %v175 = vadd.f32 %v173, %v174
    %v176 = vsel %vm162, %v136, 0.0
    %v177 = vadd.f32 %v175, %v176
    %v178 = vsel %vm162, %v137, 0.0
    %v179 = vadd.f32 %v177, %v178
    %v180 = vsel %vm162, %v138, 0.0
    %v181 = vadd.f32 %v179, %v180
    %v182 = vsel %vm162, %v139, 0.0
    %v183 = vadd.f32 %v181, %v182
    %v184 = vsel %vm162, %v140, 0.0
    %v185 = vadd.f32 %v183, %v184
    %v186 = vsel %vm162, %v141, 0.0
    %v187 = vadd.f32 %v185, %v186
    %v188 = vsel %vm162, %v142, 0.0
    %v189 = vadd.f32 %v187, %v188
    %v190 = vsel %vm162, %v143, 0.0
    %v191 = vadd.f32 %v189, %v190
    %v192 = vsel %vm162, %v144, 0.0
    %v193 = vadd.f32 %v191, %v192
    %194 = vadd.xlane.f32.xlu0 %v193
    %v195 = vpop.xlane.xlu0 %194
    %v196 = vlaneseq
    %v197 = vshrl.u32 %v196, 7
    %v198 = vadd.s32 %v197, 8
    %v199 = vlaneseq
    %v200 = vand.u32 %v199, 127
    %vm201 = vcmp.eq.s32.totalorder %v197, %v200
    %vm202 = vcmp.eq.s32.totalorder %v198, %v200
    %v203 = vsel %vm201, 1, 0
    %v204 = vsel %vm202, 1, 0
    %v205 = vcvt.s32.f32 %v203
    %v206 = vcvt.s32.f32 %v204
    %v207 = vmul.f32 %v161, %v205
    %v208 = vmul.f32 %v195, %v206
    %vm209 = vcmask 80896
    %v210 = vsel %vm209, %v207, 0.0
    %vm211 = vcmask 74752
    %v212 = vsel %vm211, %v208, 0.0
    %v213 = vadd.f32 %v210, %v212
    %v214 = vrot.slane %v213, 4
    %v215 = vadd.f32 %v213, %v214
    %v216 = vrot.slane %v215, 2
    %v217 = vadd.f32 %v215, %v216
    %v218 = vrot.slane %v217, 1
    %v219 = vadd.f32 %v217, %v218
    %v220 = vld [vmem:[%s2] sm:$0x1]
    %v221 = vadd.f32 %v219, %v220
    %v222 = vxor.u32 %v221, 2147483648
    %v223 = vmul.f32 %v222, 1.442695
    %v224 = vpow.pop %v223
    %v225 = vadd.f32 %v224, 1.0
    %v226 = vrcp.pop %v225
    %v227 = vmul.f32 %v225, %v226
    %v228 = vsub.f32 1.0, %v227
    %v229 = vmul.f32 %v226, %v228
    %v230 = vadd.f32 %v226, %v229
    %vm231 = vweird.f32 %v225
    %vm232 = vweird.f32 %v226
    %vm233 = vmor %vm231, %vm232
    %v234 = vsel %vm233, %v226, %v230
    %v235 = vand.u32 2147483647, %v225
    %vm236 = vcmp.eq.f32.partialorder %v235, 8.507059e+37
    %v237 = vand.u32 %v225, 2147483648
    %v238 = vor.u32 1.1754944e-38, %v237
    %v239 = vsel %vm236, %v238, %v234
    %v240 = vmul.f32 1.0, %v239
    %vm241 = vcmask 73728
    %242 = vst.msk [vmem:[#allocation7] sm:$0x1] %vm241, %v240
    // Predicated region
    $region22: #{tpu_custom_call.1} parent=1 // pred_check
      _
    $region23: #{tpu_custom_call.1} parent=1 // pred_check_branch
      %244 = sbr.rel (0) target = $region25
    $region24: #{tpu_custom_call.1} parent=1 // pred_region
      %246 = vsyncadd [#allocation4], 0
      %s248 = sshll.u32 [#allocation7], 4
      %s249 = int_to_ptr.vmem [resolvable:$true] %s248
      %s250 = sshll.u32 %s3, 4
      %s251 = int_to_ptr.hbm [resolvable:$true] %s250
      %253 = dma.vmem_to_hbm [thread:$0]  %s249, 16, %s251, [#allocation4]
    $region25: #{tpu_custom_call.1} parent=1 // pred_fallthru
      _
    // Predicated region
    $region26: #{tpu_custom_call.1} parent=1 // pred_check
      _
    $region27: #{tpu_custom_call.1} parent=1 // pred_check_branch
      %255 = sbr.rel (0) target = $region29
    $region28: #{tpu_custom_call.1} parent=1 // pred_region
      %257 = dma.done [#allocation4], 16
    $region29: #{tpu_custom_call.1} parent=1 // pred_fallthru
      _
    %258 = vsyncpa [#allocation3], 1
    %259 = vsyncpa [#allocation6], 1
    %260 = vsyncpa [#allocation4], 1

</llo_original>
